<compile_context>
chip_gen: v5e
topology: v5e:2x2
jax: 0.10.0
libtpu: 0.0.40
codegen_flags: <defaults>
</compile_context>

<pallas_src>
import math

import jax
import jax.numpy as jnp
from jax.experimental import pallas as pl
from jax.experimental.pallas import tpu as pltpu


def _round_up(n: int, m: int) -> int:
    return ((n + m - 1) // m) * m


def lora_kernel(x_ref, a_ref, b_ref, o_ref):
    # t = x @ A : (tm, rank).  rank is tiny, so this is a cheap narrow matmul.
    t = jnp.dot(x_ref[...], a_ref[...], preferred_element_type=jnp.float32)
    # y = t @ B : (tm, out_dim), accumulated in f32 on the MXU.
    y = jnp.dot(t, b_ref[...], preferred_element_type=jnp.float32)
    o_ref[...] = y.astype(o_ref.dtype)


def lora_forward(x, A, B, *, tm=256):
    """LoRALayer.forward: y = x @ A @ B.

    x: (..., in_dim); A: (in_dim, rank); B: (rank, out_dim).
    Returns (..., out_dim) in x.dtype.

    tm: row tile over the flattened leading dims.  256 saturates the v6e/v7x
    MXU LHS dimension; 128 is enough on v5e.  Clamped for small inputs.
    """
    *lead, in_dim = x.shape
    rank = A.shape[1]
    out_dim = B.shape[1]
    assert A.shape[0] == in_dim, "A must be (in_dim, rank)"
    assert B.shape[0] == rank, "B must be (rank, out_dim)"

    M = math.prod(lead) if lead else 1
    x2d = x.reshape(M, in_dim)

    # Clamp the tile to a sublane-aligned problem size and pad rows so the
    # grid divides evenly.  Padded rows are independent and sliced off below.
    tm = max(8, min(tm, _round_up(M, 8)))
    Mp = _round_up(M, tm)
    if Mp != M:
        x2d = jnp.pad(x2d, ((0, Mp - M), (0, 0)))

    const = lambda i: (0, 0)  # weights: same (whole) block every grid step

    out = pl.pallas_call(
        lora_kernel,
        out_shape=jax.ShapeDtypeStruct((Mp, out_dim), x.dtype),
        grid_spec=pltpu.PrefetchScalarGridSpec(
            num_scalar_prefetch=0,
            grid=(Mp // tm,),
            in_specs=[
                pl.BlockSpec((tm, in_dim), lambda i: (i, 0)),  # x row tile
                pl.BlockSpec((in_dim, rank), const),           # A (resident)
                pl.BlockSpec((rank, out_dim), const),          # B (resident)
            ],
            out_specs=pl.BlockSpec((tm, out_dim), lambda i: (i, 0)),
        ),
        compiler_params=pltpu.CompilerParams(
            dimension_semantics=("parallel",)),
    )(x2d, A, B)

    if Mp != M:
        out = out[:M]
    return out.reshape(*lead, out_dim)


def reference_forward(x, A, B):
    """Pure-JAX reference of LoRALayer.forward."""
    return (x @ A) @ B


if __name__ == "__main__":
    # Small config consistent with the module: batch=2, seq=8, in_dim=32,
    # out_dim=128 (lane-dense), LoRA rank=4.
    batch, seq, in_dim, out_dim, rank = 2, 8, 32, 128, 4

    key = jax.random.PRNGKey(0)
    k_x, k_a, k_b = jax.random.split(key, 3)

    x = jax.random.normal(k_x, (batch, seq, in_dim), jnp.float32)
    # A initialized as in the module; B is zeros at init in the module, but we
    # also test a random B since forward() must be correct for any B.
    A = jax.random.normal(k_a, (in_dim, rank), jnp.float32) / math.sqrt(rank)
    B_zero = jnp.zeros((rank, out_dim), jnp.float32)
    B_rand = jax.random.normal(k_b, (rank, out_dim), jnp.float32) * 0.02

    # Case 1: module's actual init (B = 0) -> output must be exactly zero.
    y0 = jax.block_until_ready(lora_forward(x, A, B_zero))
    assert jnp.allclose(y0, jnp.zeros_like(y0)), "zero-init B mismatch"

    # Case 2: general B -> compare against the pure-JAX reference.
    y = jax.block_until_ready(lora_forward(x, A, B_rand))
    y_ref = reference_forward(x, A, B_rand)
    assert y.shape == (batch, seq, out_dim)
    assert jnp.allclose(y, y_ref, atol=1e-4, rtol=1e-4), "mismatch vs reference"

    print("KERNEL_OK")
</pallas_src>

<mosaic_0001>
module attributes {stable_mosaic.version = 11 : i64} {
  func.func @lora_kernel(%arg0: i32, %arg1: memref<16x32xf32, #tpu.memory_space<vmem>>, %arg2: memref<32x4xf32, #tpu.memory_space<vmem>>, %arg3: memref<4x128xf32, #tpu.memory_space<vmem>>, %arg4: memref<16x128xf32, #tpu.memory_space<vmem>>) attributes {dimension_semantics = [#tpu.dimension_semantics<parallel>], iteration_bounds = array<i64: 1>, scalar_prefetch = 0 : i64, scratch_operands = 0 : i64, tpu.core_type = #tpu.core_type<tc>, window_params = [{transform_indices = @transform_0, window_bounds = array<i64: 16, 32>}, {pipeline_mode = #tpu.pipeline_mode<synchronous>, transform_indices = @transform_1, window_bounds = array<i64: 32, 4>}, {pipeline_mode = #tpu.pipeline_mode<synchronous>, transform_indices = @transform_2, window_bounds = array<i64: 4, 128>}, {transform_indices = @transform_3, window_bounds = array<i64: 16, 128>}]} {
    %c0 = arith.constant 0 : index
    %c0_0 = arith.constant 0 : index
    %0 = vector.load %arg1[%c0, %c0_0] : memref<16x32xf32, #tpu.memory_space<vmem>>, vector<16x32xf32>
    %c0_1 = arith.constant 0 : index
    %c0_2 = arith.constant 0 : index
    %1 = vector.load %arg2[%c0_1, %c0_2] : memref<32x4xf32, #tpu.memory_space<vmem>>, vector<32x4xf32>
    %cst = arith.constant dense<0.000000e+00> : vector<16x4xf32>
    %2 = tpu.matmul %0, %1, %cst {dimension_numbers = #tpu.dot_dimension_numbers<[1], [0], [0], [1], [0, 0, 1, 1], [], []>} : vector<16x32xf32>, vector<32x4xf32>, vector<16x4xf32> -> vector<16x4xf32>
    %c0_3 = arith.constant 0 : index
    %c0_4 = arith.constant 0 : index
    %3 = vector.load %arg3[%c0_3, %c0_4] : memref<4x128xf32, #tpu.memory_space<vmem>>, vector<4x128xf32>
    %cst_5 = arith.constant dense<0.000000e+00> : vector<16x128xf32>
    %4 = tpu.matmul %2, %3, %cst_5 {dimension_numbers = #tpu.dot_dimension_numbers<[1], [0], [0], [1], [0, 0, 1, 1], [], []>} : vector<16x4xf32>, vector<4x128xf32>, vector<16x128xf32> -> vector<16x128xf32>
    %c0_6 = arith.constant 0 : index
    %c0_7 = arith.constant 0 : index
    %5 = vector.load %arg4[%c0_6, %c0_7] : memref<16x128xf32, #tpu.memory_space<vmem>>, vector<16x128xf32>
    tpu.vector_store %arg4[%c0_6, %c0_7], %4 {strides = array<i32>} : memref<16x128xf32, #tpu.memory_space<vmem>>, vector<16x128xf32>,
    return
  }
  func.func @transform_0(%arg0: i32) -> (i32, i32) {
    %c0_i32 = arith.constant 0 : i32
    %c0_i32_0 = arith.constant 0 : i32
    return %arg0, %c0_i32 : i32, i32
  }
  func.func @transform_1(%arg0: i32) -> (i32, i32) {
    %c0_i32 = arith.constant 0 : i32
    %c0_i32_0 = arith.constant 0 : i32
    %c0_i32_1 = arith.constant 0 : i32
    return %c0_i32, %c0_i32_0 : i32, i32
  }
  func.func @transform_2(%arg0: i32) -> (i32, i32) {
    %c0_i32 = arith.constant 0 : i32
    %c0_i32_0 = arith.constant 0 : i32
    %c0_i32_1 = arith.constant 0 : i32
    return %c0_i32, %c0_i32_0 : i32, i32
  }
  func.func @transform_3(%arg0: i32) -> (i32, i32) {
    %c0_i32 = arith.constant 0 : i32
    %c0_i32_0 = arith.constant 0 : i32
    return %arg0, %c0_i32 : i32, i32
  }
}

</mosaic_0001>

<llo_original>
// kernel: tpu_custom_call.1
$region0: #{tpu_custom_call.1}
  #allocation0 [shape = 'u32[]', space=smem, size = 0x4, offset = 0x4, fixed_abs, tag = 'smem constant byte address 0x4 - core index']
  #allocation1 [shape = 'u32[72,128]{1,0:T(1,128)}', space=vmem, size = 0x9000, scoped, tag = 'internal scratch']
  %s0 = inlined_call_operand.vmem [shape: f32[16,32], index: 0, kind: input, shape index: {}]
  %s1 = inlined_call_operand.vmem [shape: f32[32,4], index: 1, kind: input, shape index: {}]
  %s2 = inlined_call_operand.vmem [shape: f32[4,128], index: 2, kind: input, shape index: {}]
  %s3 = inlined_call_operand.hbm [shape: f32[16,128], index: 3, kind: output, shape index: {}]
  %s4 = sld [smem:[#allocation0]]
  $region22: #{tpu_custom_call.1} parent=0
    _
  %s6 = ssub.s32 1, %s4
  %s7 = scalar_select 0, %s6, %s4
  $region1: #{tpu_custom_call.1} parent=0
    #allocation2 [shape = 'u8[8192]{0}', space=vmem, size = 0x2000, scoped, tag = 'output window, operand 0, single buffered']
    #allocation3 [shape = 's32[1]{0}', space=sflag, size = 0x4, scoped, tag = 'scoped memory for tpu_custom_call.1']
    %8 = vsyncpa [#allocation3], 0
    // Predicated region
    $region2: #{tpu_custom_call.1} parent=1 // pred_check
      _
    $region3: #{tpu_custom_call.1} parent=1 // pred_check_branch
      %10 = sbr.rel (0) target = $region5
    $region4: #{tpu_custom_call.1} parent=1 // pred_region
      _
    $region5: #{tpu_custom_call.1} parent=1 // pred_fallthru
      _
    // Predicated region
    $region6: #{tpu_custom_call.1} parent=1 // pred_check
      _
    $region7: #{tpu_custom_call.1} parent=1 // pred_check_branch
      %12 = sbr.rel (0) target = $region9
    $region8: #{tpu_custom_call.1} parent=1 // pred_region
      _
    $region9: #{tpu_custom_call.1} parent=1 // pred_fallthru
      _
    // Predicated region
    $region10: #{tpu_custom_call.1} parent=1 // pred_check
      _
    $region11: #{tpu_custom_call.1} parent=1 // pred_check_branch
      %14 = sbr.rel (0) target = $region13
    $region12: #{tpu_custom_call.1} parent=1 // pred_region
      _
    $region13: #{tpu_custom_call.1} parent=1 // pred_fallthru
      _
    %v15 = vld [vmem:[%s0] sm:$0xff]
    %v16 = vld [vmem:[%s0 + $0x8] sm:$0xff]
    %v17 = vld [vmem:[%s1] sm:$0xff]
    %v18 = vld [vmem:[%s1 + $0x8] sm:$0xff]
    %v19 = vld [vmem:[%s1 + $0x10] sm:$0xff]
    %v20 = vld [vmem:[%s1 + $0x18] sm:$0xff]
    %vm21 = vcmask 261120
    %v23 = vsel %vm21, %v15, 0
    %v26 = vsel %vm21, %v16, 0
    %28 = vmatpush.msra.mxu0 0.0
    %29 = vmatpush.msra.mxu0 0.0
    %30 = vmatpush.msra.mxu0 0.0
    %31 = vmatpush.msra.mxu0 0.0
    %32 = vmatpush.msra.mxu0 0.0
    %33 = vmatpush.msra.mxu0 0.0
    %34 = vmatpush.msra.mxu0 0.0
    %35 = vmatpush.msra.mxu0 0.0
    %36 = vmatpush.msra.mxu0 0.0
    %37 = vmatpush.msra.mxu0 0.0
    %38 = vmatpush.msra.mxu0 0.0
    %39 = vmatpush.msra.mxu0 0.0
    %40 = vmatpush.msra.mxu0 %v20
    %41 = vmatpush.msra.mxu0 %v19
    %42 = vmatpush.msra.mxu0 %v18
    %43 = vmatpush.msra.mxu0 %v17
    %44 = vmatmul.f32.gmra.mxu0 %v23
    %v45 = vpop.f32.mrf.mxu0
    %v46 = vadd.f32 0.0, %v45
    %47 = vmatmul.f32.gmra.mxu0 %v26
    %v48 = vpop.f32.mrf.mxu0
    %v49 = vadd.f32 0.0, %v48
    %50 = vdwg.mxu0
    %v51 = vld [vmem:[%s2] sm:$0xf]
    %vm52 = vcmask 31744
    %v54 = vsel %vm52, %v46, 0
    %v57 = vsel %vm52, %v49, 0
    %vm59 = vcmask 1043456
    %v61 = vsel %vm59, %v51, 0
    %63 = vmatpush.msra.mxu0 0.0
    %64 = vmatpush.msra.mxu0 0.0
    %65 = vmatpush.msra.mxu0 0.0
    %66 = vmatpush.msra.mxu0 0.0
    %67 = vmatpush.msra.mxu0 0.0
    %68 = vmatpush.msra.mxu0 0.0
    %69 = vmatpush.msra.mxu0 0.0
    %70 = vmatpush.msra.mxu0 0.0
    %71 = vmatpush.msra.mxu0 0.0
    %72 = vmatpush.msra.mxu0 0.0
    %73 = vmatpush.msra.mxu0 0.0
    %74 = vmatpush.msra.mxu0 0.0
    %75 = vmatpush.msra.mxu0 0.0
    %76 = vmatpush.msra.mxu0 0.0
    %77 = vmatpush.msra.mxu0 0.0
    %78 = vmatpush.msra.mxu0 %v61
    %79 = vmatmul.f32.gmra.mxu0 %v54
    %v80 = vpop.f32.mrf.mxu0
    %v81 = vadd.f32 0.0, %v80
    %82 = vmatmul.f32.gmra.mxu0 %v57
    %v83 = vpop.f32.mrf.mxu0
    %v84 = vadd.f32 0.0, %v83
    %85 = vdwg.mxu0
    %86 = vst [vmem:[#allocation2] sm:$0xff] %v81
    %87 = vst [vmem:[#allocation2 + $0x8] sm:$0xff] %v84
    // Predicated region
    $region14: #{tpu_custom_call.1} parent=1 // pred_check
      _
    $region15: #{tpu_custom_call.1} parent=1 // pred_check_branch
      %89 = sbr.rel (0) target = $region17
    $region16: #{tpu_custom_call.1} parent=1 // pred_region
      %91 = vsyncadd [#allocation3], 0
      %s92 = sshll.u32 [#allocation2], 4
      %s93 = int_to_ptr.vmem [resolvable:$true] %s92
      %s94 = sshll.u32 %s3, 4
      %s95 = int_to_ptr.hbm [resolvable:$true] %s94
      %100 = dma.vmem_to_hbm [thread:$0]  %s93, 256, %s95, [#allocation3], 128, 128, 8
    $region17: #{tpu_custom_call.1} parent=1 // pred_fallthru
      _
    // Predicated region
    $region18: #{tpu_custom_call.1} parent=1 // pred_check
      _
    $region19: #{tpu_custom_call.1} parent=1 // pred_check_branch
      %102 = sbr.rel (0) target = $region21
    $region20: #{tpu_custom_call.1} parent=1 // pred_region
      %104 = dma.done [#allocation3], 256
    $region21: #{tpu_custom_call.1} parent=1 // pred_fallthru
      _
    %105 = vsyncpa [#allocation3], 1

</llo_original>
